<compile_context>
chip_gen: v7x
topology: tpu7x:2x2x1
jax: 0.10.0
libtpu: 0.0.40
codegen_flags: <defaults>
</compile_context>

<pallas_src>
import jax
import jax.numpy as jnp
from jax.experimental import pallas as pl
from jax.experimental.pallas import tpu as pltpu


_LANE_CHOICES = (4096, 2048, 1024, 512, 256, 128)


def _make_scaler_kernel(rate):
    def kernel(x_ref, o_ref):
        # Exact divide (matches PyTorch `inp / rate`); `rate` is a compile-time
        # Python-float constant, so there is no per-step scalar load.
        o_ref[...] = x_ref[...] / rate
    return kernel


def scaler_forward(x, rate, *, target_tile_elems=512 * 1024):
    """Elementwise x / rate.  Same shape & dtype as x."""
    rate = float(rate)
    orig_shape = x.shape
    dtype = x.dtype
    n = x.size

    # Pick the widest lane-dense last dim that divides the flat size exactly
    # (no padding, no extra HBM passes; lane-dense writes -> unmasked `vst`).
    lane = next((L for L in _LANE_CHOICES if n and n % L == 0), None)
    if lane is None:
        # Irregular / tiny / empty size: a fused XLA elementwise op beats a
        # Pallas launch here.
        return x / rate

    rows = n // lane
    x2d = x.reshape(rows, lane)

    # ~target_tile_elems per tile; row-block aligned to the sublane packing of
    # the dtype (8 for f32, 16 for bf16, 32 for int8/fp8).
    itemsize = jnp.dtype(dtype).itemsize
    sublane = max(8, 32 // max(1, itemsize))
    block_rows = target_tile_elems // lane
    if block_rows >= rows or block_rows < sublane:
        block_rows = rows                      # one block spanning the rows axis
    else:
        block_rows = (block_rows // sublane) * sublane

    grid = (pl.cdiv(rows, block_rows),)        # ragged last block is fine

    out2d = pl.pallas_call(
        _make_scaler_kernel(rate),
        out_shape=jax.ShapeDtypeStruct((rows, lane), dtype),
        grid=grid,
        in_specs=[pl.BlockSpec((block_rows, lane), lambda i: (i, 0))],
        out_specs=pl.BlockSpec((block_rows, lane), lambda i: (i, 0)),
        compiler_params=pltpu.CompilerParams(
            dimension_semantics=("parallel",)),
    )(x2d)

    return out2d.reshape(orig_shape)


def _check(x, rate, **kw):
    out = jax.block_until_ready(scaler_forward(x, rate, **kw))
    ref = x / rate
    assert out.shape == x.shape and out.dtype == x.dtype
    assert jnp.max(jnp.abs(out - ref)) < 1e-6
    return out


if __name__ == "__main__":
    key = jax.random.PRNGKey(0)
    rate = 0.875  # deterministic "parameter" from __init__(rate)

    # Primary small NCHW input consistent with a convnet feature map:
    # 2048 elems -> lane-dense (1, 2048) slab, zero padding, single block.
    x = jax.random.normal(key, (2, 4, 16, 16), dtype=jnp.float32)
    _check(x, rate)

    # Exercise a multi-block grid (lane=4096, rows=32, block_rows=8 -> grid=(4,)).
    k1, k2 = jax.random.split(key)
    x_multi = jax.random.normal(k1, (4, 8, 32, 128), dtype=jnp.float32)
    _check(x_multi, rate, target_tile_elems=4096 * 8)

    # Exercise a ragged last block (rows=40, block_rows=16 -> grid=(3,)).
    x_ragged = jax.random.normal(k2, (5, 8, 32, 128), dtype=jnp.float32)
    _check(x_ragged, rate, target_tile_elems=4096 * 16)

    print("KERNEL_OK")
</pallas_src>

<mosaic_0001>
module attributes {stable_mosaic.version = 11 : i64} {
  func.func @kernel(%arg0: i32, %arg1: memref<1x2048xf32, #tpu.memory_space<vmem>>, %arg2: memref<1x2048xf32, #tpu.memory_space<vmem>>) attributes {dimension_semantics = [#tpu.dimension_semantics<parallel>], iteration_bounds = array<i64: 1>, scalar_prefetch = 0 : i64, scratch_operands = 0 : i64, tpu.core_type = #tpu.core_type<tc>, window_params = [{transform_indices = @transform_0, window_bounds = array<i64: 1, 2048>}, {transform_indices = @transform_1, window_bounds = array<i64: 1, 2048>}]} {
    %c0 = arith.constant 0 : index
    %c0_0 = arith.constant 0 : index
    %0 = vector.load %arg1[%c0, %c0_0] : memref<1x2048xf32, #tpu.memory_space<vmem>>, vector<1x2048xf32>
    %cst = arith.constant 8.750000e-01 : f32
    %1 = vector.broadcast %cst : f32 to vector<1x2048xf32>
    %2 = arith.divf %0, %1 : vector<1x2048xf32>
    %c0_1 = arith.constant 0 : index
    %c0_2 = arith.constant 0 : index
    %3 = vector.load %arg2[%c0_1, %c0_2] : memref<1x2048xf32, #tpu.memory_space<vmem>>, vector<1x2048xf32>
    tpu.vector_store %arg2[%c0_1, %c0_2], %2 {strides = array<i32>} : memref<1x2048xf32, #tpu.memory_space<vmem>>, vector<1x2048xf32>,
    return
  }
  func.func @transform_0(%arg0: i32) -> (i32, i32) {
    %c0_i32 = arith.constant 0 : i32
    %c0_i32_0 = arith.constant 0 : i32
    return %arg0, %c0_i32 : i32, i32
  }
  func.func @transform_1(%arg0: i32) -> (i32, i32) {
    %c0_i32 = arith.constant 0 : i32
    %c0_i32_0 = arith.constant 0 : i32
    return %arg0, %c0_i32 : i32, i32
  }
}

</mosaic_0001>

<llo_original>
// kernel: tpu_custom_call.1
$region0: #{tpu_custom_call.1}
  #allocation0 [shape = 'u32[]', space=smem, size = 0x4, offset = 0x4, fixed_abs, tag = 'smem constant byte address 0x4 - core index']
  #allocation1 [shape = 'u32[144,128]{1,0:T(1,128)}', space=vmem, size = 0x12000, scoped, tag = 'internal scratch']
  %s0 = inlined_call_operand.hbm [shape: f32[1,2048], index: 0, kind: input, shape index: {}]
  %s1 = inlined_call_operand.hbm [shape: f32[1,2048], index: 1, kind: output, shape index: {}]
  %s2 = sld [smem:[#allocation0]]
  $region18: #{tpu_custom_call.1} parent=0
    _
  %s4 = ssub.s32 1, %s2
  %s5 = scalar_select 0, %s4, %s2
  $region1: #{tpu_custom_call.1} parent=0
    #allocation2 [shape = 'u8[8192]{0}', space=vmem, size = 0x2000, scoped, tag = 'input window, operand 0, single buffered']
    #allocation3 [shape = 's32[1]{0}', space=sflag, size = 0x4, scoped, tag = 'scoped memory for tpu_custom_call.1']
    #allocation4 [shape = 's32[1]{0}', space=sflag, size = 0x4, scoped, tag = 'scoped memory for tpu_custom_call.1']
    #allocation5 [shape = 'u8[8192]{0}', space=vmem, size = 0x2000, scoped, tag = 'output window, operand 0, single buffered']
    %6 = vsyncpa [#allocation3], 0
    %7 = vsyncpa [#allocation4], 0
    // Predicated region
    $region2: #{tpu_custom_call.1} parent=1 // pred_check
      _
    $region3: #{tpu_custom_call.1} parent=1 // pred_check_branch
      %9 = sbr.rel (0) target = $region5
    $region4: #{tpu_custom_call.1} parent=1 // pred_region
      %s11 = ssub.s32 256, 256
      %12 = vsyncadd [#allocation3], %s11
      %s14 = sshll.u32 [#allocation2], 4
      %s15 = int_to_ptr.vmem [resolvable:$true] %s14
      %17 = dma.hbm_to_vmem [thread:$0]  %s0, 256, %s15, [#allocation3]
    $region5: #{tpu_custom_call.1} parent=1 // pred_fallthru
      _
    // Predicated region
    $region6: #{tpu_custom_call.1} parent=1 // pred_check
      _
    $region7: #{tpu_custom_call.1} parent=1 // pred_check_branch
      %19 = sbr.rel (0) target = $region9
    $region8: #{tpu_custom_call.1} parent=1 // pred_region
      %20 = dma.done [#allocation3], 256
    $region9: #{tpu_custom_call.1} parent=1 // pred_fallthru
      _
    %v21 = vld [vmem:[#allocation2] sm:$0xff]
    %v22 = vld [vmem:[#allocation2 + $0x8] sm:$0xff]
    %v23 = vrcp.pop 0.875
    %v24 = vmul.f32 %v21, %v23
    %v25 = vmul.f32 %v22, %v23
    %26 = vst [vmem:[#allocation5] sm:$0xff] %v24
    %27 = vst [vmem:[#allocation5 + $0x8] sm:$0xff] %v25
    // Predicated region
    $region10: #{tpu_custom_call.1} parent=1 // pred_check
      _
    $region11: #{tpu_custom_call.1} parent=1 // pred_check_branch
      %29 = sbr.rel (0) target = $region13
    $region12: #{tpu_custom_call.1} parent=1 // pred_region
      %s31 = ssub.s32 256, 256
      %32 = vsyncadd [#allocation4], %s31
      %s34 = sshll.u32 [#allocation5], 4
      %s35 = int_to_ptr.vmem [resolvable:$true] %s34
      %37 = dma.vmem_to_hbm [thread:$0]  %s35, 256, %s1, [#allocation4]
    $region13: #{tpu_custom_call.1} parent=1 // pred_fallthru
      _
    // Predicated region
    $region14: #{tpu_custom_call.1} parent=1 // pred_check
      _
    $region15: #{tpu_custom_call.1} parent=1 // pred_check_branch
      %39 = sbr.rel (0) target = $region17
    $region16: #{tpu_custom_call.1} parent=1 // pred_region
      %40 = dma.done [#allocation4], 256
    $region17: #{tpu_custom_call.1} parent=1 // pred_fallthru
      _
    %41 = vsyncpa [#allocation3], 1
    %42 = vsyncpa [#allocation4], 1

</llo_original>
